<compile_context>
chip_gen: v6e
topology: v6e:2x2x1
jax: 0.10.0
libtpu: 0.0.40
codegen_flags: <defaults>
</compile_context>

<pallas_src>
import numpy as np
import jax
import jax.numpy as jnp
from jax.experimental import pallas as pl
from jax.experimental.pallas import tpu as pltpu


def _band_matrix(n, win):
    """A[i, r] = 1 if pixel r is inside the length-`win` window anchored at i - win//2."""
    i = np.arange(n)[:, None]
    r = np.arange(n)[None, :]
    lo = i - win // 2
    return ((r >= lo) & (r <= lo + win - 1)).astype(np.float64)


def _zpool_kernel(x_ref, wop_ref, invthr_ref, o_ref):
    # x_ref:      (TM, HW)        rows = flattened (batch, channel), lanes = H*W
    # wop_ref:    (HW, nwin*HW)   bf16, concatenated per-window delta operators
    # invthr_ref: (TM, 1)         1 / (TinyWeight + min_value/10) per row
    # o_ref:      (K, TM, HW)     K = nwin + 1 feature maps of x * inv_std
    hw = x_ref.shape[1]
    nwin = wop_ref.shape[1] // hw

    x = x_ref[...]                      # f32 (TM, HW)
    inv_thr = invthr_ref[...]           # f32 (TM, 1)

    # All windowed deltas d_k = x - window_mean_k(x) in ONE MXU matmul:
    # B*C folded into M, windows concatenated along N.
    d_all = jnp.dot(x.astype(jnp.bfloat16), wop_ref[...],
                    preferred_element_type=jnp.float32)     # (TM, nwin*HW)

    inv_n = 1.0 / hw
    inv_n1 = 1.0 / (hw - 1.0)

    def _emit(k, s1, s2):
        # one-pass sample variance (ddof=1); x / max(std, thr) == x * min(1/std, 1/thr)
        var = (s2 - s1 * s1 * inv_n) * inv_n1
        inv_std = jnp.minimum(jax.lax.rsqrt(jnp.maximum(var, 0.0)), inv_thr)
        o_ref[k] = x * inv_std          # full (TM, HW) unmasked lane-dense store

    for k in range(nwin):               # static unroll, static lane slices
        dk = d_all[:, k * hw:(k + 1) * hw]
        _emit(k,
              jnp.sum(dk, axis=1, keepdims=True),
              jnp.sum(dk * dk, axis=1, keepdims=True))

    # Global-mean feature: std(x - mean(x)) == sample std of x itself, computed
    # exactly in f32 via cross-lane reductions (no all-ones operator / matmul).
    _emit(nwin,
          jnp.sum(x, axis=1, keepdims=True),
          jnp.sum(x * x, axis=1, keepdims=True))


def zpool2d_window(x, window_size_list, tiny_weight, min_value=1e-5):
    B, C, H, W = x.shape
    HW = H * W
    nwin = len(window_size_list)
    K = nwin + 1
    M = B * C

    # ---- host-side (static) per-window delta operators: I - A2^T diag(1/count) ----
    ops = []
    for w in window_size_list:
        bh = _band_matrix(H, w)                               # (H, H)
        bw = _band_matrix(W, w)                               # (W, W)
        a2 = np.kron(bh, bw)                                  # (HW, HW): a2[p, q] = q in window of p
        counts = (bh.sum(1)[:, None] * bw.sum(1)[None, :]).reshape(HW)
        mean_op = a2.T / counts[None, :]                      # column p scaled by 1/count[p]
        ops.append(np.eye(HW) - mean_op)                      # x @ op == x - window_mean(x)
    wop = np.concatenate(ops, axis=1).astype(np.float32)      # (HW, nwin*HW)
    wop = jnp.asarray(wop, dtype=jnp.bfloat16)                # halve operator HBM/VMEM bytes

    # ---- row blocking: fold B*C into M, pad to full sublanes ----
    Mpad8 = ((M + 7) // 8) * 8
    TM = min(Mpad8, 256)
    num_blocks = (Mpad8 + TM - 1) // TM
    Mpad = num_blocks * TM

    x2 = x.astype(jnp.float32).reshape(M, HW)
    x2 = jnp.pad(x2, ((0, Mpad - M), (0, 0)))                 # zero rows -> harmless, sliced off

    # per-row 1/threshold (precomputed reciprocal: no divides in-kernel)
    thr = jnp.asarray(tiny_weight, jnp.float32).reshape(1, C) + jnp.float32(min_value / 10.0)
    inv_thr = jnp.broadcast_to(1.0 / thr, (B, C)).reshape(M, 1)
    inv_thr = jnp.pad(inv_thr, ((0, Mpad - M), (0, 0)), constant_values=1.0)

    out = pl.pallas_call(
        _zpool_kernel,
        out_shape=jax.ShapeDtypeStruct((K, Mpad, HW), jnp.float32),
        grid=(num_blocks,),
        in_specs=[
            pl.BlockSpec((TM, HW), lambda m: (m, 0)),
            pl.BlockSpec((HW, nwin * HW), lambda m: (0, 0)),   # operator resident across row blocks
            pl.BlockSpec((TM, 1), lambda m: (m, 0)),
        ],
        out_specs=pl.BlockSpec((K, TM, HW), lambda m: (0, m, 0)),
        compiler_params=pltpu.CompilerParams(
            dimension_semantics=("parallel",),
        ),
    )(x2, wop, inv_thr)

    out = out[:, :M].reshape(K, B, C, H, W)
    return jnp.transpose(out, (1, 0, 2, 3, 4))                 # (B, K, C, H, W)


def ref_forward(x, window_size_list, tiny_weight, min_value=1e-5):
    """Pure-JAX transcription of the PyTorch forward (cumsum integral-image path)."""
    B, C, H, W = x.shape
    max_w = int(np.max(window_size_list))
    P = max_w // 2 + 1

    def padded_cumsum(a):
        ap = jnp.pad(a, ((0, 0), (0, 0), (P, P), (P, P)))
        return jnp.cumsum(jnp.cumsum(ap, axis=2), axis=3)

    feats = []
    for win in window_size_list:
        top = max_w // 2 - win // 2
        bottom = top + win
        left = top
        right = bottom
        top0 = -max_w // 2 - win // 2 - 1
        bottom0 = top0 + win
        left0 = top0
        right0 = bottom0
        cp = padded_cumsum(jnp.ones_like(x))
        xp = padded_cumsum(x)
        counts = (cp[:, :, top:top0, left:left0] + cp[:, :, bottom:bottom0, right:right0]
                  - cp[:, :, top:top0, right:right0] - cp[:, :, bottom:bottom0, left:left0])
        sums = (xp[:, :, top:top0, left:left0] + xp[:, :, bottom:bottom0, right:right0]
                - xp[:, :, top:top0, right:right0] - xp[:, :, bottom:bottom0, left:left0])
        feats.append(x - sums / counts)
    mu = jnp.mean(x, axis=(2, 3), keepdims=True)
    feats.append(x - mu)
    feat = jnp.stack(feats, axis=1)                               # (B, K, C, H, W)
    std = jnp.std(feat, axis=(3, 4), keepdims=True, ddof=1)
    std = jnp.maximum(std, tiny_weight + min_value / 10.0)
    xs = jnp.stack([x] * (len(window_size_list) + 1), axis=1)
    return xs / std


if __name__ == "__main__":
    B, C, H, W = 2, 4, 16, 16
    window_size_list = [3, 5]
    min_value = 1e-5

    key = jax.random.PRNGKey(0)
    x = jax.random.normal(key, (B, C, H, W), dtype=jnp.float32)
    # deterministic parameter init, same as nn.Parameter(torch.full([1,1,C,1,1], min_value))
    tiny_weight = jnp.full((1, 1, C, 1, 1), min_value, dtype=jnp.float32)

    out = zpool2d_window(x, window_size_list, tiny_weight, min_value)
    out = jax.block_until_ready(out)

    ref = ref_forward(x, window_size_list, tiny_weight, min_value)
    assert out.shape == (B, len(window_size_list) + 1, C, H, W)
    # Tolerance covers the bf16-operand / f32-accumulate MXU windowed-delta matmul.
    np.testing.assert_allclose(np.asarray(out), np.asarray(ref), rtol=2e-2, atol=2e-2)

    print("KERNEL_OK")
</pallas_src>

<mosaic_0001>
module attributes {stable_mosaic.version = 11 : i64} {
  func.func @_zpool_kernel(%arg0: i32, %arg1: memref<8x256xf32, #tpu.memory_space<vmem>>, %arg2: memref<256x512xbf16, #tpu.memory_space<vmem>>, %arg3: memref<8x1xf32, #tpu.memory_space<vmem>>, %arg4: memref<3x8x256xf32, #tpu.memory_space<vmem>>) attributes {dimension_semantics = [#tpu.dimension_semantics<parallel>], iteration_bounds = array<i64: 1>, scalar_prefetch = 0 : i64, scratch_operands = 0 : i64, tpu.core_type = #tpu.core_type<tc>, window_params = [{transform_indices = @transform_0, window_bounds = array<i64: 8, 256>}, {pipeline_mode = #tpu.pipeline_mode<synchronous>, transform_indices = @transform_1, window_bounds = array<i64: 256, 512>}, {transform_indices = @transform_2, window_bounds = array<i64: 8, 1>}, {transform_indices = @transform_3, window_bounds = array<i64: 3, 8, 256>}]} {
    %c0 = arith.constant 0 : index
    %c0_0 = arith.constant 0 : index
    %0 = vector.load %arg1[%c0, %c0_0] : memref<8x256xf32, #tpu.memory_space<vmem>>, vector<8x256xf32>
    %c0_1 = arith.constant 0 : index
    %c0_2 = arith.constant 0 : index
    %1 = vector.load %arg3[%c0_1, %c0_2] : memref<8x1xf32, #tpu.memory_space<vmem>>, vector<8x1xf32>
    %2 = arith.truncf %0 : vector<8x256xf32> to vector<8x256xbf16>
    %c0_3 = arith.constant 0 : index
    %c0_4 = arith.constant 0 : index
    %3 = vector.load %arg2[%c0_3, %c0_4] : memref<256x512xbf16, #tpu.memory_space<vmem>>, vector<256x512xbf16>
    %cst = arith.constant dense<0.000000e+00> : vector<8x512xf32>
    %4 = tpu.matmul %2, %3, %cst {dimension_numbers = #tpu.dot_dimension_numbers<[1], [0], [0], [1], [0, 0, 1, 1], [], []>} : vector<8x256xbf16>, vector<256x512xbf16>, vector<8x512xf32> -> vector<8x512xf32>
    %5 = vector.extract_strided_slice %4 {offsets = [0, 0], sizes = [8, 256], strides = [1, 1]} : vector<8x512xf32> to vector<8x256xf32>
    %cst_5 = arith.constant dense<0.000000e+00> : vector<8xf32>
    %6 = vector.multi_reduction <add>, %5, %cst_5 [1] : vector<8x256xf32> to vector<8xf32>
    %7 = vector.shape_cast %6 : vector<8xf32> to vector<8x1xf32>
    %8 = arith.mulf %5, %5 : vector<8x256xf32>
    %cst_6 = arith.constant dense<0.000000e+00> : vector<8xf32>
    %9 = vector.multi_reduction <add>, %8, %cst_6 [1] : vector<8x256xf32> to vector<8xf32>
    %10 = vector.shape_cast %9 : vector<8xf32> to vector<8x1xf32>
    %11 = arith.mulf %7, %7 : vector<8x1xf32>
    %cst_7 = arith.constant 3.906250e-03 : f32
    %12 = vector.broadcast %cst_7 : f32 to vector<8x1xf32>
    %13 = arith.mulf %11, %12 : vector<8x1xf32>
    %14 = arith.subf %10, %13 : vector<8x1xf32>
    %cst_8 = arith.constant 0.00392156886 : f32
    %15 = vector.broadcast %cst_8 : f32 to vector<8x1xf32>
    %16 = arith.mulf %14, %15 : vector<8x1xf32>
    %cst_9 = arith.constant 0.000000e+00 : f32
    %17 = vector.broadcast %cst_9 : f32 to vector<8x1xf32>
    %18 = arith.maximumf %16, %17 : vector<8x1xf32>
    %19 = math.rsqrt %18 : vector<8x1xf32>
    %20 = arith.minimumf %19, %1 : vector<8x1xf32>
    %21 = vector.broadcast %20 : vector<8x1xf32> to vector<8x256xf32>
    %22 = arith.mulf %0, %21 : vector<8x256xf32>
    %c0_10 = arith.constant 0 : index
    %c0_11 = arith.constant 0 : index
    %c0_12 = arith.constant 0 : index
    %23 = vector.load %arg4[%c0_10, %c0_11, %c0_12] : memref<3x8x256xf32, #tpu.memory_space<vmem>>, vector<1x8x256xf32>
    %24 = vector.shape_cast %23 : vector<1x8x256xf32> to vector<8x256xf32>
    %25 = vector.shape_cast %22 : vector<8x256xf32> to vector<1x8x256xf32>
    tpu.vector_store %arg4[%c0_10, %c0_11, %c0_12], %25 {strides = array<i32>} : memref<3x8x256xf32, #tpu.memory_space<vmem>>, vector<1x8x256xf32>,
    %26 = vector.extract_strided_slice %4 {offsets = [0, 256], sizes = [8, 256], strides = [1, 1]} : vector<8x512xf32> to vector<8x256xf32>
    %cst_13 = arith.constant dense<0.000000e+00> : vector<8xf32>
    %27 = vector.multi_reduction <add>, %26, %cst_13 [1] : vector<8x256xf32> to vector<8xf32>
    %28 = vector.shape_cast %27 : vector<8xf32> to vector<8x1xf32>
    %29 = arith.mulf %26, %26 : vector<8x256xf32>
    %cst_14 = arith.constant dense<0.000000e+00> : vector<8xf32>
    %30 = vector.multi_reduction <add>, %29, %cst_14 [1] : vector<8x256xf32> to vector<8xf32>
    %31 = vector.shape_cast %30 : vector<8xf32> to vector<8x1xf32>
    %32 = arith.mulf %28, %28 : vector<8x1xf32>
    %cst_15 = arith.constant 3.906250e-03 : f32
    %33 = vector.broadcast %cst_15 : f32 to vector<8x1xf32>
    %34 = arith.mulf %32, %33 : vector<8x1xf32>
    %35 = arith.subf %31, %34 : vector<8x1xf32>
    %cst_16 = arith.constant 0.00392156886 : f32
    %36 = vector.broadcast %cst_16 : f32 to vector<8x1xf32>
    %37 = arith.mulf %35, %36 : vector<8x1xf32>
    %cst_17 = arith.constant 0.000000e+00 : f32
    %38 = vector.broadcast %cst_17 : f32 to vector<8x1xf32>
    %39 = arith.maximumf %37, %38 : vector<8x1xf32>
    %40 = math.rsqrt %39 : vector<8x1xf32>
    %41 = arith.minimumf %40, %1 : vector<8x1xf32>
    %42 = vector.broadcast %41 : vector<8x1xf32> to vector<8x256xf32>
    %43 = arith.mulf %0, %42 : vector<8x256xf32>
    %c1 = arith.constant 1 : index
    %c0_18 = arith.constant 0 : index
    %c0_19 = arith.constant 0 : index
    %44 = vector.load %arg4[%c1, %c0_18, %c0_19] : memref<3x8x256xf32, #tpu.memory_space<vmem>>, vector<1x8x256xf32>
    %45 = vector.shape_cast %44 : vector<1x8x256xf32> to vector<8x256xf32>
    %46 = vector.shape_cast %43 : vector<8x256xf32> to vector<1x8x256xf32>
    tpu.vector_store %arg4[%c1, %c0_18, %c0_19], %46 {strides = array<i32>} : memref<3x8x256xf32, #tpu.memory_space<vmem>>, vector<1x8x256xf32>,
    %cst_20 = arith.constant dense<0.000000e+00> : vector<8xf32>
    %47 = vector.multi_reduction <add>, %0, %cst_20 [1] : vector<8x256xf32> to vector<8xf32>
    %48 = vector.shape_cast %47 : vector<8xf32> to vector<8x1xf32>
    %49 = arith.mulf %0, %0 : vector<8x256xf32>
    %cst_21 = arith.constant dense<0.000000e+00> : vector<8xf32>
    %50 = vector.multi_reduction <add>, %49, %cst_21 [1] : vector<8x256xf32> to vector<8xf32>
    %51 = vector.shape_cast %50 : vector<8xf32> to vector<8x1xf32>
    %52 = arith.mulf %48, %48 : vector<8x1xf32>
    %cst_22 = arith.constant 3.906250e-03 : f32
    %53 = vector.broadcast %cst_22 : f32 to vector<8x1xf32>
    %54 = arith.mulf %52, %53 : vector<8x1xf32>
    %55 = arith.subf %51, %54 : vector<8x1xf32>
    %cst_23 = arith.constant 0.00392156886 : f32
    %56 = vector.broadcast %cst_23 : f32 to vector<8x1xf32>
    %57 = arith.mulf %55, %56 : vector<8x1xf32>
    %cst_24 = arith.constant 0.000000e+00 : f32
    %58 = vector.broadcast %cst_24 : f32 to vector<8x1xf32>
    %59 = arith.maximumf %57, %58 : vector<8x1xf32>
    %60 = math.rsqrt %59 : vector<8x1xf32>
    %61 = arith.minimumf %60, %1 : vector<8x1xf32>
    %62 = vector.broadcast %61 : vector<8x1xf32> to vector<8x256xf32>
    %63 = arith.mulf %0, %62 : vector<8x256xf32>
    %c2 = arith.constant 2 : index
    %c0_25 = arith.constant 0 : index
    %c0_26 = arith.constant 0 : index
    %64 = vector.load %arg4[%c2, %c0_25, %c0_26] : memref<3x8x256xf32, #tpu.memory_space<vmem>>, vector<1x8x256xf32>
    %65 = vector.shape_cast %64 : vector<1x8x256xf32> to vector<8x256xf32>
    %66 = vector.shape_cast %63 : vector<8x256xf32> to vector<1x8x256xf32>
    tpu.vector_store %arg4[%c2, %c0_25, %c0_26], %66 {strides = array<i32>} : memref<3x8x256xf32, #tpu.memory_space<vmem>>, vector<1x8x256xf32>,
    return
  }
  func.func @transform_0(%arg0: i32) -> (i32, i32) {
    %c0_i32 = arith.constant 0 : i32
    %c0_i32_0 = arith.constant 0 : i32
    return %arg0, %c0_i32 : i32, i32
  }
  func.func @transform_1(%arg0: i32) -> (i32, i32) {
    %c0_i32 = arith.constant 0 : i32
    %c0_i32_0 = arith.constant 0 : i32
    %c0_i32_1 = arith.constant 0 : i32
    return %c0_i32, %c0_i32_0 : i32, i32
  }
  func.func @transform_2(%arg0: i32) -> (i32, i32) {
    %c0_i32 = arith.constant 0 : i32
    %c0_i32_0 = arith.constant 0 : i32
    return %arg0, %c0_i32 : i32, i32
  }
  func.func @transform_3(%arg0: i32) -> (i32, i32, i32) {
    %c0_i32 = arith.constant 0 : i32
    %c0_i32_0 = arith.constant 0 : i32
    %c0_i32_1 = arith.constant 0 : i32
    return %c0_i32, %arg0, %c0_i32_0 : i32, i32, i32
  }
}

</mosaic_0001>

<llo_original>
// kernel: tpu_custom_call.1
$region0: #{tpu_custom_call.1}
  #allocation0 [shape = 'u32[]', space=smem, size = 0x4, offset = 0x4, fixed_abs, tag = 'smem constant byte address 0x4 - core index']
  #allocation1 [shape = 'u32[144,128]{1,0:T(1,128)}', space=vmem, size = 0x12000, scoped, tag = 'internal scratch']
  %s0 = inlined_call_operand.hbm [shape: f32[8,256], index: 0, kind: input, shape index: {}]
  %s1 = inlined_call_operand.hbm [shape: bf16[256,512], index: 1, kind: input, shape index: {}]
  %s2 = inlined_call_operand.vmem [shape: f32[8,1], index: 2, kind: input, shape index: {}]
  %s3 = inlined_call_operand.hbm [shape: f32[3,8,256], index: 3, kind: output, shape index: {}]
  %s4 = sld [smem:[#allocation0]]
  $region30: #{tpu_custom_call.1} parent=0
    _
  %s6 = ssub.s32 1, %s4
  %s7 = scalar_select 0, %s6, %s4
  $region1: #{tpu_custom_call.1} parent=0
    #allocation2 [shape = 'u8[8192]{0}', space=vmem, size = 0x2000, scoped, tag = 'input window, operand 0, single buffered']
    #allocation3 [shape = 's32[1]{0}', space=sflag, size = 0x4, scoped, tag = 'scoped memory for tpu_custom_call.1']
    #allocation4 [shape = 's32[1]{0}', space=sflag, size = 0x4, scoped, tag = 'scoped memory for tpu_custom_call.1']
    #allocation5 [shape = 'u8[262144]{0}', space=vmem, size = 0x40000, scoped, tag = 'input window, operand 1, single buffered']
    #allocation6 [shape = 's32[1]{0}', space=sflag, size = 0x4, scoped, tag = 'scoped memory for tpu_custom_call.1']
    #allocation7 [shape = 'u8[24576]{0}', space=vmem, size = 0x6000, scoped, tag = 'output window, operand 0, single buffered']
    %8 = vsyncpa [#allocation3], 0
    %9 = vsyncpa [#allocation6], 0
    %10 = vsyncpa [#allocation4], 0
    // Predicated region
    $region2: #{tpu_custom_call.1} parent=1 // pred_check
      _
    $region3: #{tpu_custom_call.1} parent=1 // pred_check_branch
      %12 = sbr.rel (0) target = $region5
    $region4: #{tpu_custom_call.1} parent=1 // pred_region
      %s14 = ssub.s32 256, 256
      %15 = vsyncadd [#allocation3], %s14
      %s17 = sshll.u32 [#allocation2], 4
      %s18 = int_to_ptr.vmem [resolvable:$true] %s17
      %20 = dma.hbm_to_vmem [thread:$0]  %s0, 256, %s18, [#allocation3]
    $region5: #{tpu_custom_call.1} parent=1 // pred_fallthru
      _
    // Predicated region
    $region6: #{tpu_custom_call.1} parent=1 // pred_check
      _
    $region7: #{tpu_custom_call.1} parent=1 // pred_check_branch
      %22 = sbr.rel (0) target = $region9
    $region8: #{tpu_custom_call.1} parent=1 // pred_region
      %s24 = ssub.s32 8192, 8192
      %25 = vsyncadd [#allocation6], %s24
      %s26 = sshll.u32 [#allocation5], 4
      %s27 = int_to_ptr.vmem [resolvable:$true] %s26
      %32 = dma.hbm_to_vmem [thread:$0]  %s1, 8192, %s27, [#allocation6], 256, 256, 16
    $region9: #{tpu_custom_call.1} parent=1 // pred_fallthru
      _
    // Predicated region
    $region10: #{tpu_custom_call.1} parent=1 // pred_check
      _
    $region11: #{tpu_custom_call.1} parent=1 // pred_check_branch
      %34 = sbr.rel (0) target = $region13
    $region12: #{tpu_custom_call.1} parent=1 // pred_region
      _
    $region13: #{tpu_custom_call.1} parent=1 // pred_fallthru
      _
    // Predicated region
    $region14: #{tpu_custom_call.1} parent=1 // pred_check
      _
    $region15: #{tpu_custom_call.1} parent=1 // pred_check_branch
      %36 = sbr.rel (0) target = $region17
    $region16: #{tpu_custom_call.1} parent=1 // pred_region
      %37 = dma.done [#allocation3], 256
    $region17: #{tpu_custom_call.1} parent=1 // pred_fallthru
      _
    // Predicated region
    $region18: #{tpu_custom_call.1} parent=1 // pred_check
      _
    $region19: #{tpu_custom_call.1} parent=1 // pred_check_branch
      %39 = sbr.rel (0) target = $region21
    $region20: #{tpu_custom_call.1} parent=1 // pred_region
      %40 = dma.done [#allocation6], 8192
    $region21: #{tpu_custom_call.1} parent=1 // pred_fallthru
      _
    %v41 = vld [vmem:[#allocation2] sm:$0xff]
    %v42 = vld [vmem:[#allocation2 + $0x8] sm:$0xff]
    %v43 = vld [vmem:[%s2] sm:$0xff]
    %v44 = vpack.c.bf16 %v41, %v41
    %v45 = vpack.c.bf16 %v42, %v42
    %v46 = vld [vmem:[#allocation5] sm:$0xff]
    %v47 = vld [vmem:[#allocation5 + $0x8] sm:$0xff]
    %v48 = vld [vmem:[#allocation5 + $0x10] sm:$0xff]
    %v49 = vld [vmem:[#allocation5 + $0x18] sm:$0xff]
    %v50 = vld [vmem:[#allocation5 + $0x20] sm:$0xff]
    %v51 = vld [vmem:[#allocation5 + $0x28] sm:$0xff]
    %v52 = vld [vmem:[#allocation5 + $0x30] sm:$0xff]
    %v53 = vld [vmem:[#allocation5 + $0x38] sm:$0xff]
    %v54 = vld [vmem:[#allocation5 + $0x40] sm:$0xff]
    %v55 = vld [vmem:[#allocation5 + $0x48] sm:$0xff]
    %v56 = vld [vmem:[#allocation5 + $0x50] sm:$0xff]
    %v57 = vld [vmem:[#allocation5 + $0x58] sm:$0xff]
    %v58 = vld [vmem:[#allocation5 + $0x60] sm:$0xff]
    %v59 = vld [vmem:[#allocation5 + $0x68] sm:$0xff]
    %v60 = vld [vmem:[#allocation5 + $0x70] sm:$0xff]
    %v61 = vld [vmem:[#allocation5 + $0x78] sm:$0xff]
    %v62 = vld [vmem:[#allocation5 + $0x80] sm:$0xff]
    %v63 = vld [vmem:[#allocation5 + $0x88] sm:$0xff]
    %v64 = vld [vmem:[#allocation5 + $0x90] sm:$0xff]
    %v65 = vld [vmem:[#allocation5 + $0x98] sm:$0xff]
    %v66 = vld [vmem:[#allocation5 + $0xa0] sm:$0xff]
    %v67 = vld [vmem:[#allocation5 + $0xa8] sm:$0xff]
    %v68 = vld [vmem:[#allocation5 + $0xb0] sm:$0xff]
    %v69 = vld [vmem:[#allocation5 + $0xb8] sm:$0xff]
    %v70 = vld [vmem:[#allocation5 + $0xc0] sm:$0xff]
    %v71 = vld [vmem:[#allocation5 + $0xc8] sm:$0xff]
    %v72 = vld [vmem:[#allocation5 + $0xd0] sm:$0xff]
    %v73 = vld [vmem:[#allocation5 + $0xd8] sm:$0xff]
    %v74 = vld [vmem:[#allocation5 + $0xe0] sm:$0xff]
    %v75 = vld [vmem:[#allocation5 + $0xe8] sm:$0xff]
    %v76 = vld [vmem:[#allocation5 + $0xf0] sm:$0xff]
    %v77 = vld [vmem:[#allocation5 + $0xf8] sm:$0xff]
    %v78 = vld [vmem:[#allocation5 + $0x100] sm:$0xff]
    %v79 = vld [vmem:[#allocation5 + $0x108] sm:$0xff]
    %v80 = vld [vmem:[#allocation5 + $0x110] sm:$0xff]
    %v81 = vld [vmem:[#allocation5 + $0x118] sm:$0xff]
    %v82 = vld [vmem:[#allocation5 + $0x120] sm:$0xff]
    %v83 = vld [vmem:[#allocation5 + $0x128] sm:$0xff]
    %v84 = vld [vmem:[#allocation5 + $0x130] sm:$0xff]
    %v85 = vld [vmem:[#allocation5 + $0x138] sm:$0xff]
    %v86 = vld [vmem:[#allocation5 + $0x140] sm:$0xff]
    %v87 = vld [vmem:[#allocation5 + $0x148] sm:$0xff]
    %v88 = vld [vmem:[#allocation5 + $0x150] sm:$0xff]
    %v89 = vld [vmem:[#allocation5 + $0x158] sm:$0xff]
    %v90 = vld [vmem:[#allocation5 + $0x160] sm:$0xff]
    %v91 = vld [vmem:[#allocation5 + $0x168] sm:$0xff]
    %v92 = vld [vmem:[#allocation5 + $0x170] sm:$0xff]
    %v93 = vld [vmem:[#allocation5 + $0x178] sm:$0xff]
    %v94 = vld [vmem:[#allocation5 + $0x180] sm:$0xff]
    %v95 = vld [vmem:[#allocation5 + $0x188] sm:$0xff]
    %v96 = vld [vmem:[#allocation5 + $0x190] sm:$0xff]
    %v97 = vld [vmem:[#allocation5 + $0x198] sm:$0xff]
    %v98 = vld [vmem:[#allocation5 + $0x1a0] sm:$0xff]
    %v99 = vld [vmem:[#allocation5 + $0x1a8] sm:$0xff]
    %v100 = vld [vmem:[#allocation5 + $0x1b0] sm:$0xff]
    %v101 = vld [vmem:[#allocation5 + $0x1b8] sm:$0xff]
    %v102 = vld [vmem:[#allocation5 + $0x1c0] sm:$0xff]
    %v103 = vld [vmem:[#allocation5 + $0x1c8] sm:$0xff]
    %v104 = vld [vmem:[#allocation5 + $0x1d0] sm:$0xff]
    %v105 = vld [vmem:[#allocation5 + $0x1d8] sm:$0xff]
    %v106 = vld [vmem:[#allocation5 + $0x1e0] sm:$0xff]
    %v107 = vld [vmem:[#allocation5 + $0x1e8] sm:$0xff]
    %v108 = vld [vmem:[#allocation5 + $0x1f0] sm:$0xff]
    %v109 = vld [vmem:[#allocation5 + $0x1f8] sm:$0xff]
    %v174 = vunpack.c.l.b16 %v46
    %v175 = vunpack.c.h.b16 %v46
    %v176 = vunpack.c.l.b16 %v47
    %v177 = vunpack.c.h.b16 %v47
    %v178 = vunpack.c.l.b16 %v48
    %v179 = vunpack.c.h.b16 %v48
    %v180 = vunpack.c.l.b16 %v49
    %v181 = vunpack.c.h.b16 %v49
    %v182 = vunpack.c.l.b16 %v50
    %v183 = vunpack.c.h.b16 %v50
    %v184 = vunpack.c.l.b16 %v51
    %v185 = vunpack.c.h.b16 %v51
    %v186 = vunpack.c.l.b16 %v52
    %v187 = vunpack.c.h.b16 %v52
    %v188 = vunpack.c.l.b16 %v53
    %v189 = vunpack.c.h.b16 %v53
    %v190 = vunpack.c.l.b16 %v54
    %v191 = vunpack.c.h.b16 %v54
    %v192 = vunpack.c.l.b16 %v55
    %v193 = vunpack.c.h.b16 %v55
    %v194 = vunpack.c.l.b16 %v56
    %v195 = vunpack.c.h.b16 %v56
    %v196 = vunpack.c.l.b16 %v57
    %v197 = vunpack.c.h.b16 %v57
    %v198 = vunpack.c.l.b16 %v58
    %v199 = vunpack.c.h.b16 %v58
    %v200 = vunpack.c.l.b16 %v59
    %v201 = vunpack.c.h.b16 %v59
    %v202 = vunpack.c.l.b16 %v60
    %v203 = vunpack.c.h.b16 %v60
    %v204 = vunpack.c.l.b16 %v61
    %v205 = vunpack.c.h.b16 %v61
    %v206 = vunpack.c.l.b16 %v62
    %v207 = vunpack.c.h.b16 %v62
    %v208 = vunpack.c.l.b16 %v63
    %v209 = vunpack.c.h.b16 %v63
    %v210 = vunpack.c.l.b16 %v64
    %v211 = vunpack.c.h.b16 %v64
    %v212 = vunpack.c.l.b16 %v65
    %v213 = vunpack.c.h.b16 %v65
    %v214 = vunpack.c.l.b16 %v66
    %v215 = vunpack.c.h.b16 %v66
    %v216 = vunpack.c.l.b16 %v67
    %v217 = vunpack.c.h.b16 %v67
    %v218 = vunpack.c.l.b16 %v68
    %v219 = vunpack.c.h.b16 %v68
    %v220 = vunpack.c.l.b16 %v69
    %v221 = vunpack.c.h.b16 %v69
    %v222 = vunpack.c.l.b16 %v70
    %v223 = vunpack.c.h.b16 %v70
    %v224 = vunpack.c.l.b16 %v71
    %v225 = vunpack.c.h.b16 %v71
    %v226 = vunpack.c.l.b16 %v72
    %v227 = vunpack.c.h.b16 %v72
    %v228 = vunpack.c.l.b16 %v73
    %v229 = vunpack.c.h.b16 %v73
    %v230 = vunpack.c.l.b16 %v74
    %v231 = vunpack.c.h.b16 %v74
    %v232 = vunpack.c.l.b16 %v75
    %v233 = vunpack.c.h.b16 %v75
    %v234 = vunpack.c.l.b16 %v76
    %v235 = vunpack.c.h.b16 %v76
    %v236 = vunpack.c.l.b16 %v77
    %v237 = vunpack.c.h.b16 %v77
    %v238 = vunpack.c.l.b16 %v78
    %v239 = vunpack.c.h.b16 %v78
    %v240 = vunpack.c.l.b16 %v79
    %v241 = vunpack.c.h.b16 %v79
    %v242 = vunpack.c.l.b16 %v80
    %v243 = vunpack.c.h.b16 %v80
    %v244 = vunpack.c.l.b16 %v81
    %v245 = vunpack.c.h.b16 %v81
    %v246 = vunpack.c.l.b16 %v82
    %v247 = vunpack.c.h.b16 %v82
    %v248 = vunpack.c.l.b16 %v83
    %v249 = vunpack.c.h.b16 %v83
    %v250 = vunpack.c.l.b16 %v84
    %v251 = vunpack.c.h.b16 %v84
    %v252 = vunpack.c.l.b16 %v85
    %v253 = vunpack.c.h.b16 %v85
    %v254 = vunpack.c.l.b16 %v86
    %v255 = vunpack.c.h.b16 %v86
    %v256 = vunpack.c.l.b16 %v87
    %v257 = vunpack.c.h.b16 %v87
    %v258 = vunpack.c.l.b16 %v88
    %v259 = vunpack.c.h.b16 %v88
    %v260 = vunpack.c.l.b16 %v89
    %v261 = vunpack.c.h.b16 %v89
    %v262 = vunpack.c.l.b16 %v90
    %v263 = vunpack.c.h.b16 %v90
    %v264 = vunpack.c.l.b16 %v91
    %v265 = vunpack.c.h.b16 %v91
    %v266 = vunpack.c.l.b16 %v92
    %v267 = vunpack.c.h.b16 %v92
    %v268 = vunpack.c.l.b16 %v93
    %v269 = vunpack.c.h.b16 %v93
    %v270 = vunpack.c.l.b16 %v94
    %v271 = vunpack.c.h.b16 %v94
    %v272 = vunpack.c.l.b16 %v95
    %v273 = vunpack.c.h.b16 %v95
    %v274 = vunpack.c.l.b16 %v96
    %v275 = vunpack.c.h.b16 %v96
    %v276 = vunpack.c.l.b16 %v97
    %v277 = vunpack.c.h.b16 %v97
    %v278 = vunpack.c.l.b16 %v98
    %v279 = vunpack.c.h.b16 %v98
    %v280 = vunpack.c.l.b16 %v99
    %v281 = vunpack.c.h.b16 %v99
    %v282 = vunpack.c.l.b16 %v100
    %v283 = vunpack.c.h.b16 %v100
    %v284 = vunpack.c.l.b16 %v101
    %v285 = vunpack.c.h.b16 %v101
    %v286 = vunpack.c.l.b16 %v102
    %v287 = vunpack.c.h.b16 %v102
    %v288 = vunpack.c.l.b16 %v103
    %v289 = vunpack.c.h.b16 %v103
    %v290 = vunpack.c.l.b16 %v104
    %v291 = vunpack.c.h.b16 %v104
    %v292 = vunpack.c.l.b16 %v105
    %v293 = vunpack.c.h.b16 %v105
    %v294 = vunpack.c.l.b16 %v106
    %v295 = vunpack.c.h.b16 %v106
    %v296 = vunpack.c.l.b16 %v107
    %v297 = vunpack.c.h.b16 %v107
    %v298 = vunpack.c.l.b16 %v108
    %v299 = vunpack.c.h.b16 %v108
    %v300 = vunpack.c.l.b16 %v109
    %v301 = vunpack.c.h.b16 %v109
    %v302 = vpack.c.b16 %v178, %v174
    %v303 = vpack.c.b16 %v179, %v175
    %v304 = vpack.c.b16 %v180, %v176
    %v305 = vpack.c.b16 %v181, %v177
    %v306 = vpack.c.b16 %v186, %v182
    %v307 = vpack.c.b16 %v187, %v183
    %v308 = vpack.c.b16 %v188, %v184
    %v309 = vpack.c.b16 %v189, %v185
    %v310 = vpack.c.b16 %v194, %v190
    %v311 = vpack.c.b16 %v195, %v191
    %v312 = vpack.c.b16 %v196, %v192
    %v313 = vpack.c.b16 %v197, %v193
    %v314 = vpack.c.b16 %v202, %v198
    %v315 = vpack.c.b16 %v203, %v199
    %v316 = vpack.c.b16 %v204, %v200
    %v317 = vpack.c.b16 %v205, %v201
    %v318 = vpack.c.b16 %v210, %v206
    %v319 = vpack.c.b16 %v211, %v207
    %v320 = vpack.c.b16 %v212, %v208
    %v321 = vpack.c.b16 %v213, %v209
    %v322 = vpack.c.b16 %v218, %v214
    %v323 = vpack.c.b16 %v219, %v215
    %v324 = vpack.c.b16 %v220, %v216
    %v325 = vpack.c.b16 %v221, %v217
    %v326 = vpack.c.b16 %v226, %v222
    %v327 = vpack.c.b16 %v227, %v223
    %v328 = vpack.c.b16 %v228, %v224
    %v329 = vpack.c.b16 %v229, %v225
    %v330 = vpack.c.b16 %v234, %v230
    %v331 = vpack.c.b16 %v235, %v231
    %v332 = vpack.c.b16 %v236, %v232
    %v333 = vpack.c.b16 %v237, %v233
    %v334 = vpack.c.b16 %v242, %v238
    %v335 = vpack.c.b16 %v243, %v239
    %v336 = vpack.c.b16 %v244, %v240
    %v337 = vpack.c.b16 %v245, %v241
    %v338 = vpack.c.b16 %v250, %v246
    %v339 = vpack.c.b16 %v251, %v247
    %v340 = vpack.c.b16 %v252, %v248
    %v341 = vpack.c.b16 %v253, %v249
    %v342 = vpack.c.b16 %v258, %v254
    %v343 = vpack.c.b16 %v259, %v255
    %v344 = vpack.c.b16 %v260, %v256
    %v345 = vpack.c.b16 %v261, %v257
    %v346 = vpack.c.b16 %v266, %v262
    %v347 = vpack.c.b16 %v267, %v263
    %v348 = vpack.c.b16 %v268, %v264
    %v349 = vpack.c.b16 %v269, %v265
    %v350 = vpack.c.b16 %v274, %v270
    %v351 = vpack.c.b16 %v275, %v271
    %v352 = vpack.c.b16 %v276, %v272
    %v353 = vpack.c.b16 %v277, %v273
    %v354 = vpack.c.b16 %v282, %v278
    %v355 = vpack.c.b16 %v283, %v279
    %v356 = vpack.c.b16 %v284, %v280
    %v357 = vpack.c.b16 %v285, %v281
    %v358 = vpack.c.b16 %v290, %v286
    %v359 = vpack.c.b16 %v291, %v287
    %v360 = vpack.c.b16 %v292, %v288
    %v361 = vpack.c.b16 %v293, %v289
    %v362 = vpack.c.b16 %v298, %v294
    %v363 = vpack.c.b16 %v299, %v295
    %v364 = vpack.c.b16 %v300, %v296
    %v365 = vpack.c.b16 %v301, %v297
    %430 = vmatprep.subr.bf16.mxu0 %v331
    %431 = vmatpush1.bf16.msra.mxu0 %v330
    %432 = vmatprep.subr.bf16.mxu0 %v327
    %433 = vmatpush1.bf16.msra.mxu0 %v326
    %434 = vmatprep.subr.bf16.mxu0 %v323
    %435 = vmatpush1.bf16.msra.mxu0 %v322
    %436 = vmatprep.subr.bf16.mxu0 %v319
    %437 = vmatpush1.bf16.msra.mxu0 %v318
    %438 = vmatprep.subr.bf16.mxu0 %v315
    %439 = vmatpush1.bf16.msra.mxu0 %v314
    %440 = vmatprep.subr.bf16.mxu0 %v311
    %441 = vmatpush1.bf16.msra.mxu0 %v310
    %442 = vmatprep.subr.bf16.mxu0 %v307
    %443 = vmatpush1.bf16.msra.mxu0 %v306
    %444 = vmatprep.subr.bf16.mxu0 %v303
    %445 = vmatpush1.bf16.msra.mxu0 %v302
    %446 = vmatprep.subr.bf16.mxu0 %v363
    %447 = vmatpush2.bf16.msra.mxu0 %v362
    %448 = vmatprep.subr.bf16.mxu0 %v359
    %449 = vmatpush2.bf16.msra.mxu0 %v358
    %450 = vmatprep.subr.bf16.mxu0 %v355
    %451 = vmatpush2.bf16.msra.mxu0 %v354
    %452 = vmatprep.subr.bf16.mxu0 %v351
    %453 = vmatpush2.bf16.msra.mxu0 %v350
    %454 = vmatprep.subr.bf16.mxu0 %v347
    %455 = vmatpush2.bf16.msra.mxu0 %v346
    %456 = vmatprep.subr.bf16.mxu0 %v343
    %457 = vmatpush2.bf16.msra.mxu0 %v342
    %458 = vmatprep.subr.bf16.mxu0 %v339
    %459 = vmatpush2.bf16.msra.mxu0 %v338
    %460 = vmatprep.subr.bf16.mxu0 %v335
    %461 = vmatpush2.bf16.msra.mxu0 %v334
    %462 = vmatprep.mubr.bf16.mxu0 %v45
    %463 = vmatmul.mubr.bf16.gmra.mxu0 %v44
    %v464 = vpop.f32.mrf.mxu0
    %v465 = vadd.f32 0.0, %v464
    %v466 = vpop.f32.mrf.mxu0
    %v467 = vadd.f32 0.0, %v466
    %v468 = vpop.f32.mrf.mxu0
    %v469 = vpop.f32.mrf.mxu0
    %470 = vdwg.mxu0
    %471 = vmatprep.subr.bf16.mxu0 %v333
    %472 = vmatpush1.bf16.msra.mxu0 %v332
    %473 = vmatprep.subr.bf16.mxu0 %v329
    %474 = vmatpush1.bf16.msra.mxu0 %v328
    %475 = vmatprep.subr.bf16.mxu0 %v325
    %476 = vmatpush1.bf16.msra.mxu0 %v324
    %477 = vmatprep.subr.bf16.mxu0 %v321
    %478 = vmatpush1.bf16.msra.mxu0 %v320
    %479 = vmatprep.subr.bf16.mxu0 %v317
    %480 = vmatpush1.bf16.msra.mxu0 %v316
    %481 = vmatprep.subr.bf16.mxu0 %v313
    %482 = vmatpush1.bf16.msra.mxu0 %v312
    %483 = vmatprep.subr.bf16.mxu0 %v309
    %484 = vmatpush1.bf16.msra.mxu0 %v308
    %485 = vmatprep.subr.bf16.mxu0 %v305
    %486 = vmatpush1.bf16.msra.mxu0 %v304
    %487 = vmatprep.subr.bf16.mxu0 %v365
    %488 = vmatpush2.bf16.msra.mxu0 %v364
    %489 = vmatprep.subr.bf16.mxu0 %v361
    %490 = vmatpush2.bf16.msra.mxu0 %v360
    %491 = vmatprep.subr.bf16.mxu0 %v357
    %492 = vmatpush2.bf16.msra.mxu0 %v356
    %493 = vmatprep.subr.bf16.mxu0 %v353
    %494 = vmatpush2.bf16.msra.mxu0 %v352
    %495 = vmatprep.subr.bf16.mxu0 %v349
    %496 = vmatpush2.bf16.msra.mxu0 %v348
    %497 = vmatprep.subr.bf16.mxu0 %v345
    %498 = vmatpush2.bf16.msra.mxu0 %v344
    %499 = vmatprep.subr.bf16.mxu0 %v341
    %500 = vmatpush2.bf16.msra.mxu0 %v340
    %501 = vmatprep.subr.bf16.mxu0 %v337
    %502 = vmatpush2.bf16.msra.mxu0 %v336
    %503 = vmatprep.mubr.bf16.mxu0 %v45
    %504 = vmatmul.mubr.bf16.gmra.mxu0 %v44
    %v505 = vpop.f32.mrf.mxu0
    %v506 = vadd.f32 0.0, %v505
    %v507 = vpop.f32.mrf.mxu0
    %v508 = vadd.f32 0.0, %v507
    %v509 = vpop.f32.mrf.mxu0
    %v510 = vpop.f32.mrf.mxu0
    %511 = vdwg.mxu0
    %v512 = vadd.f32 %v465, %v467
    %513 = vadd.xlane.f32.xlu0 %v512
    %v514 = vpop.xlane.xlu0 %513
    %v515 = vmul.f32 %v465, %v465
    %v516 = vmul.f32 %v467, %v467
    %v517 = vadd.f32 %v515, %v516
    %518 = vadd.xlane.f32.xlu0 %v517
    %v519 = vpop.xlane.xlu0 %518
    %v520 = vmul.f32 %v514, %v514
    %v521 = vmul.f32 %v520, 0.00390625
    %v522 = vsub.f32 %v519, %v521
    %v523 = vmul.f32 %v522, 0.003921569
    %v524 = vmax.f32 %v523, 0.0
    %v525 = vrsqrt.pop %v524
    %v526 = vmin.f32 %v525, %v43
    %528 = vset.pattern.permute.xlu0 0
    %529 = vperm.xlu0 %528, %v526
    %v530 = vpop.permute.xlu0 %529
    %v532 = vmul.f32 %v41, %v530
    %v533 = vmul.f32 %v42, %v530
    %534 = vst [vmem:[#allocation7] sm:$0xff] %v532
    %535 = vst [vmem:[#allocation7 + $0x8] sm:$0xff] %v533
    %v536 = vadd.f32 %v506, %v508
    %537 = vadd.xlane.f32.xlu0 %v536
    %v538 = vpop.xlane.xlu0 %537
    %v539 = vmul.f32 %v506, %v506
    %v540 = vmul.f32 %v508, %v508
    %v541 = vadd.f32 %v539, %v540
    %542 = vadd.xlane.f32.xlu0 %v541
    %v543 = vpop.xlane.xlu0 %542
    %v544 = vmul.f32 %v538, %v538
    %v545 = vmul.f32 %v544, 0.00390625
    %v546 = vsub.f32 %v543, %v545
    %v547 = vmul.f32 %v546, 0.003921569
    %v548 = vmax.f32 %v547, 0.0
    %v549 = vrsqrt.pop %v548
    %v550 = vmin.f32 %v549, %v43
    %552 = vset.pattern.permute.xlu0 0
    %553 = vperm.xlu0 %552, %v550
    %v554 = vpop.permute.xlu0 %553
    %v556 = vmul.f32 %v41, %v554
    %v557 = vmul.f32 %v42, %v554
    %s558 = scalar_lea.vmem [#allocation7], 16
    %559 = vst [vmem:[%s558] sm:$0xff] %v556
    %560 = vst [vmem:[%s558 + $0x8] sm:$0xff] %v557
    %v561 = vadd.f32 %v41, %v42
    %562 = vadd.xlane.f32.xlu0 %v561
    %v563 = vpop.xlane.xlu0 %562
    %v564 = vmul.f32 %v41, %v41
    %v565 = vmul.f32 %v42, %v42
    %v566 = vadd.f32 %v564, %v565
    %567 = vadd.xlane.f32.xlu0 %v566
    %v568 = vpop.xlane.xlu0 %567
    %v569 = vmul.f32 %v563, %v563
    %v570 = vmul.f32 %v569, 0.00390625
    %v571 = vsub.f32 %v568, %v570
    %v572 = vmul.f32 %v571, 0.003921569
    %v573 = vmax.f32 %v572, 0.0
    %v574 = vrsqrt.pop %v573
    %v575 = vmin.f32 %v574, %v43
    %577 = vset.pattern.permute.xlu0 0
    %578 = vperm.xlu0 %577, %v575
    %v579 = vpop.permute.xlu0 %578
    %v581 = vmul.f32 %v41, %v579
    %v582 = vmul.f32 %v42, %v579
    %s583 = scalar_lea.vmem [#allocation7], 32
    %584 = vst [vmem:[%s583] sm:$0xff] %v581
    %585 = vst [vmem:[%s583 + $0x8] sm:$0xff] %v582
    // Predicated region
    $region22: #{tpu_custom_call.1} parent=1 // pred_check
      _
    $region23: #{tpu_custom_call.1} parent=1 // pred_check_branch
      %587 = sbr.rel (0) target = $region25
    $region24: #{tpu_custom_call.1} parent=1 // pred_region
      %s589 = ssub.s32 768, 768
      %590 = vsyncadd [#allocation4], %s589
      %s591 = sshll.u32 [#allocation7], 4
      %s592 = int_to_ptr.vmem [resolvable:$true] %s591
      %597 = dma.vmem_to_hbm [thread:$0]  %s592, 768, %s3, [#allocation4], 256, 256, 16
    $region25: #{tpu_custom_call.1} parent=1 // pred_fallthru
      _
    // Predicated region
    $region26: #{tpu_custom_call.1} parent=1 // pred_check
      _
    $region27: #{tpu_custom_call.1} parent=1 // pred_check_branch
      %599 = sbr.rel (0) target = $region29
    $region28: #{tpu_custom_call.1} parent=1 // pred_region
      %600 = dma.done [#allocation4], 768
    $region29: #{tpu_custom_call.1} parent=1 // pred_fallthru
      _
    %601 = vsyncpa [#allocation3], 1
    %602 = vsyncpa [#allocation6], 1
    %603 = vsyncpa [#allocation4], 1

</llo_original>
